<compile_context>
chip_gen: v5e
topology: v5e:2x2
jax: 0.10.0
libtpu: 0.0.40
codegen_flags: <defaults>
</compile_context>

<pallas_src>
import functools

import jax
import jax.numpy as jnp
from jax.experimental import pallas as pl
from jax.experimental.pallas import tpu as pltpu


def _round_up(x, m):
    return (x + m - 1) // m * m


def _pad2(m, r, c):
    return jnp.pad(m, ((0, r - m.shape[0]), (0, c - m.shape[1])))


def _vmem_limit_bytes():
    """Generation-aware scoped-VMEM request (leave headroom for XLA)."""
    try:
        cap = pltpu.get_tpu_info().vmem_capacity_bytes
    except Exception:
        cap = 64 * 1024 * 1024
    return 40 * 1024 * 1024 if cap <= 64 * 1024 * 1024 else 96 * 1024 * 1024


# -------------- fused single-launch kernel (small / medium graphs) -----------
def _fused_kernel(a_ref, x_ref, w1_ref, b1_ref, wh_ref, bh_ref, o_ref):
    a = a_ref[...]                                              # bf16, reused twice
    xw = jnp.dot(x_ref[...], w1_ref[...], preferred_element_type=jnp.float32)
    h = jnp.dot(a, xw.astype(jnp.bfloat16), preferred_element_type=jnp.float32)
    h = jnp.maximum(h + b1_ref[...], 0.0)                       # f32 elementwise
    hw = jnp.dot(h.astype(jnp.bfloat16), wh_ref[...],
                 preferred_element_type=jnp.float32)
    out = jnp.dot(a, hw.astype(jnp.bfloat16), preferred_element_type=jnp.float32)
    o_ref[...] = (out + bh_ref[...]).astype(o_ref.dtype)


# --------------------- row-tiled path (large graphs) -------------------------
# stage 1: XW = X @ W1
def _xw_kernel(x_ref, w_ref, o_ref):
    o_ref[...] = jnp.dot(
        x_ref[...], w_ref[...], preferred_element_type=jnp.float32
    ).astype(o_ref.dtype)


# stage 2: HW = relu(A_tile @ XW + b1) @ W_heads   (fused mu/logstd heads)
def _layer1_kernel(a_ref, xw_ref, b1_ref, wh_ref, hw_ref):
    h = jnp.dot(a_ref[...], xw_ref[...], preferred_element_type=jnp.float32)
    h = jnp.maximum(h + b1_ref[...], 0.0)
    hw_ref[...] = jnp.dot(
        h.astype(wh_ref.dtype), wh_ref[...], preferred_element_type=jnp.float32
    ).astype(hw_ref.dtype)


# stage 3: [mu | logstd] = A_tile @ HW + b_heads
def _agg_kernel(a_ref, hw_ref, bh_ref, o_ref):
    acc = jnp.dot(a_ref[...], hw_ref[...], preferred_element_type=jnp.float32)
    o_ref[...] = (acc + bh_ref[...]).astype(o_ref.dtype)


# ------------------------------ one-time prep --------------------------------
def normalized_adjacency(edge_index, num_nodes):
    """Dense A_hat = D^{-1/2}(A + I)D^{-1/2}; aggregation at dst (PyG flow)."""
    src = edge_index[0]
    dst = edge_index[1]
    adj = jnp.zeros((num_nodes, num_nodes), jnp.float32)
    adj = adj.at[dst, src].set(1.0)                      # message src -> dst
    idx = jnp.arange(num_nodes)
    adj = adj.at[idx, idx].set(1.0)                      # self-loops
    deg = adj.sum(axis=1)
    dinv = jnp.where(deg > 0, 1.0 / jnp.sqrt(deg), 0.0)
    return dinv[:, None] * adj * dinv[None, :]


def prepare_adjacency(edge_index, num_nodes, *, row_tile=256):
    """Build A_hat once, already padded to a row-tile multiple and cast bf16."""
    n_pad = _round_up(num_nodes, row_tile)
    a_hat = normalized_adjacency(edge_index, num_nodes)
    return _pad2(a_hat, n_pad, n_pad).astype(jnp.bfloat16)


def prepare_weights(w1, b1, wmu, bmu, wls, bls):
    """Fuse mu/logstd heads and pad all weights lane-dense (done once)."""
    f_in, hidden = w1.shape
    out = wmu.shape[1]
    f_pad = _round_up(f_in, 128)
    h_pad = _round_up(hidden, 128)
    p_pad = _round_up(2 * out, 128)
    w_heads = jnp.concatenate([wmu, wls], axis=1)                  # [H, 2*OUT]
    b_heads = jnp.concatenate([bmu.reshape(1, -1), bls.reshape(1, -1)], axis=1)
    w1_p = _pad2(w1, f_pad, h_pad).astype(jnp.bfloat16)
    b1_p = _pad2(b1.reshape(1, -1), 1, h_pad).astype(jnp.float32)
    wh_p = _pad2(w_heads, h_pad, p_pad).astype(jnp.bfloat16)
    bh_p = _pad2(b_heads, 1, p_pad).astype(jnp.float32)
    return w1_p, b1_p, wh_p, bh_p, out


# ------------------------------- forward pass --------------------------------
@functools.partial(jax.jit, static_argnames=("n", "out", "tm", "mode"))
def encoder_forward(a_pad, x, w1_p, b1_p, wh_p, bh_p, *, n, out, tm=256,
                    mode="auto"):
    """Inputs must come from prepare_adjacency / prepare_weights."""
    n_pad = a_pad.shape[0]
    f_pad, h_pad = w1_p.shape
    p_pad = wh_p.shape[1]
    assert n_pad % tm == 0, "row tile must divide padded node count"

    # Per-call feature padding only (N*F, not N^2).
    x_p = _pad2(x, n_pad, f_pad).astype(jnp.bfloat16)

    vmem = _vmem_limit_bytes()

    if mode == "auto":
        mode = "fused" if n_pad <= 2048 else "tiled"

    if mode == "fused":
        # Everything resident in VMEM; one launch, one read of A_hat.
        def full(r, c):
            return pl.BlockSpec((r, c), lambda i: (0, 0))

        heads = pl.pallas_call(
            _fused_kernel,
            out_shape=jax.ShapeDtypeStruct((n_pad, p_pad), jnp.float32),
            grid_spec=pltpu.PrefetchScalarGridSpec(
                num_scalar_prefetch=0, grid=(1,),
                in_specs=[full(n_pad, n_pad), full(n_pad, f_pad),
                          full(f_pad, h_pad), full(1, h_pad),
                          full(h_pad, p_pad), full(1, p_pad)],
                out_specs=full(n_pad, p_pad)),
            compiler_params=pltpu.CompilerParams(
                dimension_semantics=("arbitrary",),
                vmem_limit_bytes=vmem),
        )(a_pad, x_p, w1_p, b1_p, wh_p, bh_p)
    else:
        # Row-tiled 3-stage path for graphs whose working set exceeds VMEM.
        grid = (n_pad // tm,)
        params = pltpu.CompilerParams(
            dimension_semantics=("parallel",),
            vmem_limit_bytes=vmem,
        )

        def row_spec(c):
            return pl.BlockSpec((tm, c), lambda i: (i, 0))

        def full_spec(r, c):
            return pl.BlockSpec((r, c), lambda i: (0, 0))

        xw = pl.pallas_call(
            _xw_kernel,
            out_shape=jax.ShapeDtypeStruct((n_pad, h_pad), jnp.bfloat16),
            grid_spec=pltpu.PrefetchScalarGridSpec(
                num_scalar_prefetch=0, grid=grid,
                in_specs=[row_spec(f_pad), full_spec(f_pad, h_pad)],
                out_specs=row_spec(h_pad)),
            compiler_params=params,
        )(x_p, w1_p)

        hw = pl.pallas_call(
            _layer1_kernel,
            out_shape=jax.ShapeDtypeStruct((n_pad, p_pad), jnp.bfloat16),
            grid_spec=pltpu.PrefetchScalarGridSpec(
                num_scalar_prefetch=0, grid=grid,
                in_specs=[row_spec(n_pad),
                          full_spec(n_pad, h_pad),
                          full_spec(1, h_pad),
                          full_spec(h_pad, p_pad)],
                out_specs=row_spec(p_pad)),
            compiler_params=params,
        )(a_pad, xw, b1_p, wh_p)

        heads = pl.pallas_call(
            _agg_kernel,
            out_shape=jax.ShapeDtypeStruct((n_pad, p_pad), jnp.float32),
            grid_spec=pltpu.PrefetchScalarGridSpec(
                num_scalar_prefetch=0, grid=grid,
                in_specs=[row_spec(n_pad),
                          full_spec(n_pad, p_pad),
                          full_spec(1, p_pad)],
                out_specs=row_spec(p_pad)),
            compiler_params=params,
        )(a_pad, hw, bh_p)

    mu = heads[:n, :out]
    logstd = heads[:n, out:2 * out]
    return mu, logstd


if __name__ == "__main__":
    # Deterministic problem: 256 nodes, ring graph (both directions).
    N = 256
    F_IN = 64
    HIDDEN = 32
    OUT = 8

    key = jax.random.PRNGKey(0)
    k_x, k_w1, k_b1, k_wmu, k_bmu, k_wls, k_bls = jax.random.split(key, 7)

    x = jax.random.normal(k_x, (N, F_IN), dtype=jnp.float32)

    src = jnp.arange(N, dtype=jnp.int32)
    dst = (src + 1) % N
    edge_index = jnp.stack([jnp.concatenate([src, dst]),
                            jnp.concatenate([dst, src])], axis=0)

    def glorot(k, shape):
        fan_in, fan_out = shape
        scale = jnp.sqrt(6.0 / (fan_in + fan_out))
        return jax.random.uniform(k, shape, jnp.float32, -scale, scale)

    w1 = glorot(k_w1, (F_IN, HIDDEN))
    b1 = 0.1 * jax.random.normal(k_b1, (HIDDEN,), dtype=jnp.float32)
    wmu = glorot(k_wmu, (HIDDEN, OUT))
    bmu = 0.1 * jax.random.normal(k_bmu, (OUT,), dtype=jnp.float32)
    wls = glorot(k_wls, (HIDDEN, OUT))
    bls = 0.1 * jax.random.normal(k_bls, (OUT,), dtype=jnp.float32)

    # ---- one-time prep (hoisted out of the per-call path) ----
    a_pad = prepare_adjacency(edge_index, N, row_tile=256)
    w1_p, b1_p, wh_p, bh_p, out_dim = prepare_weights(w1, b1, wmu, bmu, wls, bls)

    # ---- pure-JAX f32 reference (kernel uses bf16 MXU + f32 accumulation) ----
    a_hat = normalized_adjacency(edge_index, N)
    h_ref = jnp.maximum(a_hat @ (x @ w1) + b1[None, :], 0.0)
    mu_ref = a_hat @ (h_ref @ wmu) + bmu[None, :]
    ls_ref = a_hat @ (h_ref @ wls) + bls[None, :]

    # ---- fused single-kernel path (auto-selected at this problem size) ----
    mu, logstd = encoder_forward(a_pad, x, w1_p, b1_p, wh_p, bh_p,
                                 n=N, out=out_dim, tm=256, mode="fused")
    jax.block_until_ready((mu, logstd))
    assert mu.shape == (N, OUT) and logstd.shape == (N, OUT)
    assert jnp.allclose(mu, mu_ref, atol=5e-2, rtol=5e-2), "fused mu mismatch"
    assert jnp.allclose(logstd, ls_ref, atol=5e-2, rtol=5e-2), "fused logstd mismatch"

    # ---- row-tiled fallback path (tm=128 -> 2 grid steps) also verified ----
    mu_t, logstd_t = encoder_forward(a_pad, x, w1_p, b1_p, wh_p, bh_p,
                                     n=N, out=out_dim, tm=128, mode="tiled")
    jax.block_until_ready((mu_t, logstd_t))
    assert jnp.allclose(mu_t, mu_ref, atol=5e-2, rtol=5e-2), "tiled mu mismatch"
    assert jnp.allclose(logstd_t, ls_ref, atol=5e-2, rtol=5e-2), "tiled logstd mismatch"

    print("KERNEL_OK")
</pallas_src>

<mosaic_0001>
module attributes {stable_mosaic.version = 11 : i64} {
  func.func @_fused_kernel(%arg0: i32, %arg1: memref<256x256xbf16, #tpu.memory_space<vmem>>, %arg2: memref<256x128xbf16, #tpu.memory_space<vmem>>, %arg3: memref<128x128xbf16, #tpu.memory_space<vmem>>, %arg4: memref<1x128xf32, #tpu.memory_space<vmem>>, %arg5: memref<128x128xbf16, #tpu.memory_space<vmem>>, %arg6: memref<1x128xf32, #tpu.memory_space<vmem>>, %arg7: memref<256x128xf32, #tpu.memory_space<vmem>>) attributes {dimension_semantics = [#tpu.dimension_semantics<arbitrary>], iteration_bounds = array<i64: 1>, scalar_prefetch = 0 : i64, scratch_operands = 0 : i64, tpu.core_type = #tpu.core_type<tc>, window_params = [{pipeline_mode = #tpu.pipeline_mode<synchronous>, transform_indices = @transform_0, window_bounds = array<i64: 256, 256>}, {pipeline_mode = #tpu.pipeline_mode<synchronous>, transform_indices = @transform_1, window_bounds = array<i64: 256, 128>}, {pipeline_mode = #tpu.pipeline_mode<synchronous>, transform_indices = @transform_2, window_bounds = array<i64: 128, 128>}, {pipeline_mode = #tpu.pipeline_mode<synchronous>, transform_indices = @transform_3, window_bounds = array<i64: 1, 128>}, {pipeline_mode = #tpu.pipeline_mode<synchronous>, transform_indices = @transform_4, window_bounds = array<i64: 128, 128>}, {pipeline_mode = #tpu.pipeline_mode<synchronous>, transform_indices = @transform_5, window_bounds = array<i64: 1, 128>}, {pipeline_mode = #tpu.pipeline_mode<synchronous>, transform_indices = @transform_6, window_bounds = array<i64: 256, 128>}]} {
    %c0 = arith.constant 0 : index
    %c0_0 = arith.constant 0 : index
    %0 = vector.load %arg1[%c0, %c0_0] : memref<256x256xbf16, #tpu.memory_space<vmem>>, vector<256x256xbf16>
    %c0_1 = arith.constant 0 : index
    %c0_2 = arith.constant 0 : index
    %1 = vector.load %arg2[%c0_1, %c0_2] : memref<256x128xbf16, #tpu.memory_space<vmem>>, vector<256x128xbf16>
    %c0_3 = arith.constant 0 : index
    %c0_4 = arith.constant 0 : index
    %2 = vector.load %arg3[%c0_3, %c0_4] : memref<128x128xbf16, #tpu.memory_space<vmem>>, vector<128x128xbf16>
    %cst = arith.constant dense<0.000000e+00> : vector<256x128xf32>
    %3 = tpu.matmul %1, %2, %cst {dimension_numbers = #tpu.dot_dimension_numbers<[1], [0], [0], [1], [0, 0, 1, 1], [], []>} : vector<256x128xbf16>, vector<128x128xbf16>, vector<256x128xf32> -> vector<256x128xf32>
    %4 = arith.truncf %3 : vector<256x128xf32> to vector<256x128xbf16>
    %cst_5 = arith.constant dense<0.000000e+00> : vector<256x128xf32>
    %5 = tpu.matmul %0, %4, %cst_5 {dimension_numbers = #tpu.dot_dimension_numbers<[1], [0], [0], [1], [0, 0, 1, 1], [], []>} : vector<256x256xbf16>, vector<256x128xbf16>, vector<256x128xf32> -> vector<256x128xf32>
    %c0_6 = arith.constant 0 : index
    %c0_7 = arith.constant 0 : index
    %6 = vector.load %arg4[%c0_6, %c0_7] : memref<1x128xf32, #tpu.memory_space<vmem>>, vector<1x128xf32>
    %7 = vector.broadcast %6 : vector<1x128xf32> to vector<256x128xf32>
    %8 = arith.addf %5, %7 : vector<256x128xf32>
    %cst_8 = arith.constant 0.000000e+00 : f32
    %9 = vector.broadcast %cst_8 : f32 to vector<256x128xf32>
    %10 = arith.maximumf %8, %9 : vector<256x128xf32>
    %11 = arith.truncf %10 : vector<256x128xf32> to vector<256x128xbf16>
    %c0_9 = arith.constant 0 : index
    %c0_10 = arith.constant 0 : index
    %12 = vector.load %arg5[%c0_9, %c0_10] : memref<128x128xbf16, #tpu.memory_space<vmem>>, vector<128x128xbf16>
    %cst_11 = arith.constant dense<0.000000e+00> : vector<256x128xf32>
    %13 = tpu.matmul %11, %12, %cst_11 {dimension_numbers = #tpu.dot_dimension_numbers<[1], [0], [0], [1], [0, 0, 1, 1], [], []>} : vector<256x128xbf16>, vector<128x128xbf16>, vector<256x128xf32> -> vector<256x128xf32>
    %14 = arith.truncf %13 : vector<256x128xf32> to vector<256x128xbf16>
    %cst_12 = arith.constant dense<0.000000e+00> : vector<256x128xf32>
    %15 = tpu.matmul %0, %14, %cst_12 {dimension_numbers = #tpu.dot_dimension_numbers<[1], [0], [0], [1], [0, 0, 1, 1], [], []>} : vector<256x256xbf16>, vector<256x128xbf16>, vector<256x128xf32> -> vector<256x128xf32>
    %c0_13 = arith.constant 0 : index
    %c0_14 = arith.constant 0 : index
    %16 = vector.load %arg6[%c0_13, %c0_14] : memref<1x128xf32, #tpu.memory_space<vmem>>, vector<1x128xf32>
    %17 = vector.broadcast %16 : vector<1x128xf32> to vector<256x128xf32>
    %18 = arith.addf %15, %17 : vector<256x128xf32>
    %c0_15 = arith.constant 0 : index
    %c0_16 = arith.constant 0 : index
    %19 = vector.load %arg7[%c0_15, %c0_16] : memref<256x128xf32, #tpu.memory_space<vmem>>, vector<256x128xf32>
    tpu.vector_store %arg7[%c0_15, %c0_16], %18 {strides = array<i32>} : memref<256x128xf32, #tpu.memory_space<vmem>>, vector<256x128xf32>,
    return
  }
  func.func @transform_0(%arg0: i32) -> (i32, i32) {
    %c0_i32 = arith.constant 0 : i32
    %c0_i32_0 = arith.constant 0 : i32
    %c0_i32_1 = arith.constant 0 : i32
    return %c0_i32, %c0_i32_0 : i32, i32
  }
  func.func @transform_1(%arg0: i32) -> (i32, i32) {
    %c0_i32 = arith.constant 0 : i32
    %c0_i32_0 = arith.constant 0 : i32
    %c0_i32_1 = arith.constant 0 : i32
    return %c0_i32, %c0_i32_0 : i32, i32
  }
  func.func @transform_2(%arg0: i32) -> (i32, i32) {
    %c0_i32 = arith.constant 0 : i32
    %c0_i32_0 = arith.constant 0 : i32
    %c0_i32_1 = arith.constant 0 : i32
    return %c0_i32, %c0_i32_0 : i32, i32
  }
  func.func @transform_3(%arg0: i32) -> (i32, i32) {
    %c0_i32 = arith.constant 0 : i32
    %c0_i32_0 = arith.constant 0 : i32
    %c0_i32_1 = arith.constant 0 : i32
    return %c0_i32, %c0_i32_0 : i32, i32
  }
  func.func @transform_4(%arg0: i32) -> (i32, i32) {
    %c0_i32 = arith.constant 0 : i32
    %c0_i32_0 = arith.constant 0 : i32
    %c0_i32_1 = arith.constant 0 : i32
    return %c0_i32, %c0_i32_0 : i32, i32
  }
  func.func @transform_5(%arg0: i32) -> (i32, i32) {
    %c0_i32 = arith.constant 0 : i32
    %c0_i32_0 = arith.constant 0 : i32
    %c0_i32_1 = arith.constant 0 : i32
    return %c0_i32, %c0_i32_0 : i32, i32
  }
  func.func @transform_6(%arg0: i32) -> (i32, i32) {
    %c0_i32 = arith.constant 0 : i32
    %c0_i32_0 = arith.constant 0 : i32
    %c0_i32_1 = arith.constant 0 : i32
    return %c0_i32, %c0_i32_0 : i32, i32
  }
}

</mosaic_0001>

<llo_original>
// kernel: encoder_forward.1
$region0: #{encoder_forward.1}
  #allocation0 [shape = 'u32[]', space=smem, size = 0x4, offset = 0x4, fixed_abs, tag = 'smem constant byte address 0x4 - core index']
  #allocation1 [shape = 'u32[72,128]{1,0:T(1,128)}', space=vmem, size = 0x9000, scoped, tag = 'internal scratch']
  %s0 = inlined_call_operand.vmem [shape: bf16[256,256], index: 0, kind: input, shape index: {}]
  %s1 = inlined_call_operand.vmem [shape: bf16[256,128], index: 1, kind: input, shape index: {}]
  %s2 = inlined_call_operand.vmem [shape: bf16[128,128], index: 2, kind: input, shape index: {}]
  %s3 = inlined_call_operand.vmem [shape: f32[1,128], index: 3, kind: input, shape index: {}]
  %s4 = inlined_call_operand.vmem [shape: bf16[128,128], index: 4, kind: input, shape index: {}]
  %s5 = inlined_call_operand.vmem [shape: f32[1,128], index: 5, kind: input, shape index: {}]
  %s6 = inlined_call_operand.vmem [shape: f32[256,128], index: 6, kind: output, shape index: {}]
  %s7 = sld [smem:[#allocation0]]
  $region34: #{encoder_forward.1} parent=0
    _
  %s9 = ssub.s32 1, %s7
  %s10 = scalar_select 0, %s9, %s7
  // Predicated region
  $region2: #{encoder_forward.1} parent=0 // pred_check
    _
  $region3: #{encoder_forward.1} parent=0 // pred_check_branch
    %12 = sbr.rel (0) target = $region5
  $region4: #{encoder_forward.1} parent=0 // pred_region
    _
  $region5: #{encoder_forward.1} parent=0 // pred_fallthru
    _
  // Predicated region
  $region6: #{encoder_forward.1} parent=0 // pred_check
    _
  $region7: #{encoder_forward.1} parent=0 // pred_check_branch
    %14 = sbr.rel (0) target = $region9
  $region8: #{encoder_forward.1} parent=0 // pred_region
    _
  $region9: #{encoder_forward.1} parent=0 // pred_fallthru
    _
  // Predicated region
  $region10: #{encoder_forward.1} parent=0 // pred_check
    _
  $region11: #{encoder_forward.1} parent=0 // pred_check_branch
    %16 = sbr.rel (0) target = $region13
  $region12: #{encoder_forward.1} parent=0 // pred_region
    _
  $region13: #{encoder_forward.1} parent=0 // pred_fallthru
    _
  // Predicated region
  $region14: #{encoder_forward.1} parent=0 // pred_check
    _
  $region15: #{encoder_forward.1} parent=0 // pred_check_branch
    %18 = sbr.rel (0) target = $region17
  $region16: #{encoder_forward.1} parent=0 // pred_region
    _
  $region17: #{encoder_forward.1} parent=0 // pred_fallthru
    _
  // Predicated region
  $region18: #{encoder_forward.1} parent=0 // pred_check
    _
  $region19: #{encoder_forward.1} parent=0 // pred_check_branch
    %20 = sbr.rel (0) target = $region21
  $region20: #{encoder_forward.1} parent=0 // pred_region
    _
  $region21: #{encoder_forward.1} parent=0 // pred_fallthru
    _
  // Predicated region
  $region22: #{encoder_forward.1} parent=0 // pred_check
    _
  $region23: #{encoder_forward.1} parent=0 // pred_check_branch
    %22 = sbr.rel (0) target = $region25
  $region24: #{encoder_forward.1} parent=0 // pred_region
    _
  $region25: #{encoder_forward.1} parent=0 // pred_fallthru
    _
  %v23 = vld [vmem:[%s0] sm:$0xff]
  %v24 = vld [vmem:[%s0 + $0x8] sm:$0xff]
  %v25 = vld [vmem:[%s0 + $0x10] sm:$0xff]
  %v26 = vld [vmem:[%s0 + $0x18] sm:$0xff]
  %v27 = vld [vmem:[%s0 + $0x20] sm:$0xff]
  %v28 = vld [vmem:[%s0 + $0x28] sm:$0xff]
  %v29 = vld [vmem:[%s0 + $0x30] sm:$0xff]
  %v30 = vld [vmem:[%s0 + $0x38] sm:$0xff]
  %v31 = vld [vmem:[%s0 + $0x40] sm:$0xff]
  %v32 = vld [vmem:[%s0 + $0x48] sm:$0xff]
  %v33 = vld [vmem:[%s0 + $0x50] sm:$0xff]
  %v34 = vld [vmem:[%s0 + $0x58] sm:$0xff]
  %v35 = vld [vmem:[%s0 + $0x60] sm:$0xff]
  %v36 = vld [vmem:[%s0 + $0x68] sm:$0xff]
  %v37 = vld [vmem:[%s0 + $0x70] sm:$0xff]
  %v38 = vld [vmem:[%s0 + $0x78] sm:$0xff]
  %v39 = vld [vmem:[%s0 + $0x80] sm:$0xff]
  %v40 = vld [vmem:[%s0 + $0x88] sm:$0xff]
  %v41 = vld [vmem:[%s0 + $0x90] sm:$0xff]
  %v42 = vld [vmem:[%s0 + $0x98] sm:$0xff]
  %v43 = vld [vmem:[%s0 + $0xa0] sm:$0xff]
  %v44 = vld [vmem:[%s0 + $0xa8] sm:$0xff]
  %v45 = vld [vmem:[%s0 + $0xb0] sm:$0xff]
  %v46 = vld [vmem:[%s0 + $0xb8] sm:$0xff]
  %v47 = vld [vmem:[%s0 + $0xc0] sm:$0xff]
  %v48 = vld [vmem:[%s0 + $0xc8] sm:$0xff]
  %v49 = vld [vmem:[%s0 + $0xd0] sm:$0xff]
  %v50 = vld [vmem:[%s0 + $0xd8] sm:$0xff]
  %v51 = vld [vmem:[%s0 + $0xe0] sm:$0xff]
  %v52 = vld [vmem:[%s0 + $0xe8] sm:$0xff]
  %v53 = vld [vmem:[%s0 + $0xf0] sm:$0xff]
  %v54 = vld [vmem:[%s0 + $0xf8] sm:$0xff]
  %v55 = vld [vmem:[%s1] sm:$0xf]
  %v56 = vld [vmem:[%s1 + $0x4] sm:$0xf]
  %v57 = vld [vmem:[%s1 + $0x8] sm:$0xf]
  %v58 = vld [vmem:[%s1 + $0xc] sm:$0xf]
  %v59 = vld [vmem:[%s1 + $0x10] sm:$0xf]
  %v60 = vld [vmem:[%s1 + $0x14] sm:$0xf]
  %v61 = vld [vmem:[%s1 + $0x18] sm:$0xf]
  %v62 = vld [vmem:[%s1 + $0x1c] sm:$0xf]
  %v63 = vld [vmem:[%s1 + $0x20] sm:$0xf]
  %v64 = vld [vmem:[%s1 + $0x24] sm:$0xf]
  %v65 = vld [vmem:[%s1 + $0x28] sm:$0xf]
  %v66 = vld [vmem:[%s1 + $0x2c] sm:$0xf]
  %v67 = vld [vmem:[%s1 + $0x30] sm:$0xf]
  %v68 = vld [vmem:[%s1 + $0x34] sm:$0xf]
  %v69 = vld [vmem:[%s1 + $0x38] sm:$0xf]
  %v70 = vld [vmem:[%s1 + $0x3c] sm:$0xf]
  %v71 = vld [vmem:[%s1 + $0x40] sm:$0xf]
  %v72 = vld [vmem:[%s1 + $0x44] sm:$0xf]
  %v73 = vld [vmem:[%s1 + $0x48] sm:$0xf]
  %v74 = vld [vmem:[%s1 + $0x4c] sm:$0xf]
  %v75 = vld [vmem:[%s1 + $0x50] sm:$0xf]
  %v76 = vld [vmem:[%s1 + $0x54] sm:$0xf]
  %v77 = vld [vmem:[%s1 + $0x58] sm:$0xf]
  %v78 = vld [vmem:[%s1 + $0x5c] sm:$0xf]
  %v79 = vld [vmem:[%s1 + $0x60] sm:$0xf]
  %v80 = vld [vmem:[%s1 + $0x64] sm:$0xf]
  %v81 = vld [vmem:[%s1 + $0x68] sm:$0xf]
  %v82 = vld [vmem:[%s1 + $0x6c] sm:$0xf]
  %v83 = vld [vmem:[%s1 + $0x70] sm:$0xf]
  %v84 = vld [vmem:[%s1 + $0x74] sm:$0xf]
  %v85 = vld [vmem:[%s1 + $0x78] sm:$0xf]
  %v86 = vld [vmem:[%s1 + $0x7c] sm:$0xf]
  %v87 = vld [vmem:[%s2] sm:$0xf]
  %v88 = vld [vmem:[%s2 + $0x4] sm:$0xf]
  %v89 = vld [vmem:[%s2 + $0x8] sm:$0xf]
  %v90 = vld [vmem:[%s2 + $0xc] sm:$0xf]
  %v91 = vld [vmem:[%s2 + $0x10] sm:$0xf]
  %v92 = vld [vmem:[%s2 + $0x14] sm:$0xf]
  %v93 = vld [vmem:[%s2 + $0x18] sm:$0xf]
  %v94 = vld [vmem:[%s2 + $0x1c] sm:$0xf]
  %v95 = vld [vmem:[%s2 + $0x20] sm:$0xf]
  %v96 = vld [vmem:[%s2 + $0x24] sm:$0xf]
  %v97 = vld [vmem:[%s2 + $0x28] sm:$0xf]
  %v98 = vld [vmem:[%s2 + $0x2c] sm:$0xf]
  %v99 = vld [vmem:[%s2 + $0x30] sm:$0xf]
  %v100 = vld [vmem:[%s2 + $0x34] sm:$0xf]
  %v101 = vld [vmem:[%s2 + $0x38] sm:$0xf]
  %v102 = vld [vmem:[%s2 + $0x3c] sm:$0xf]
  %v135 = vunpack.c.l.b16 %v55
  %v136 = vunpack.c.l.b16 %v56
  %v137 = vunpack.c.l.b16 %v57
  %v138 = vunpack.c.l.b16 %v58
  %v139 = vunpack.c.l.b16 %v59
  %v140 = vunpack.c.l.b16 %v60
  %v141 = vunpack.c.l.b16 %v61
  %v142 = vunpack.c.l.b16 %v62
  %v143 = vunpack.c.l.b16 %v63
  %v144 = vunpack.c.l.b16 %v64
  %v145 = vunpack.c.l.b16 %v65
  %v146 = vunpack.c.l.b16 %v66
  %v147 = vunpack.c.l.b16 %v67
  %v148 = vunpack.c.l.b16 %v68
  %v149 = vunpack.c.l.b16 %v69
  %v150 = vunpack.c.l.b16 %v70
  %v151 = vunpack.c.l.b16 %v71
  %v152 = vunpack.c.l.b16 %v72
  %v153 = vunpack.c.l.b16 %v73
  %v154 = vunpack.c.l.b16 %v74
  %v155 = vunpack.c.l.b16 %v75
  %v156 = vunpack.c.l.b16 %v76
  %v157 = vunpack.c.l.b16 %v77
  %v158 = vunpack.c.l.b16 %v78
  %v159 = vunpack.c.l.b16 %v79
  %v160 = vunpack.c.l.b16 %v80
  %v161 = vunpack.c.l.b16 %v81
  %v162 = vunpack.c.l.b16 %v82
  %v163 = vunpack.c.l.b16 %v83
  %v164 = vunpack.c.l.b16 %v84
  %v165 = vunpack.c.l.b16 %v85
  %v166 = vunpack.c.l.b16 %v86
  %v167 = vpack.c.b16 %v136, %v135
  %v168 = vpack.c.b16 %v138, %v137
  %v169 = vpack.c.b16 %v140, %v139
  %v170 = vpack.c.b16 %v142, %v141
  %v171 = vpack.c.b16 %v144, %v143
  %v172 = vpack.c.b16 %v146, %v145
  %v173 = vpack.c.b16 %v148, %v147
  %v174 = vpack.c.b16 %v150, %v149
  %v175 = vpack.c.b16 %v152, %v151
  %v176 = vpack.c.b16 %v154, %v153
  %v177 = vpack.c.b16 %v156, %v155
  %v178 = vpack.c.b16 %v158, %v157
  %v179 = vpack.c.b16 %v160, %v159
  %v180 = vpack.c.b16 %v162, %v161
  %v181 = vpack.c.b16 %v164, %v163
  %v182 = vpack.c.b16 %v166, %v165
  %v215 = vunpack.c.l.b16 %v87
  %v216 = vunpack.c.l.b16 %v88
  %v217 = vunpack.c.l.b16 %v89
  %v218 = vunpack.c.l.b16 %v90
  %v219 = vunpack.c.l.b16 %v91
  %v220 = vunpack.c.l.b16 %v92
  %v221 = vunpack.c.l.b16 %v93
  %v222 = vunpack.c.l.b16 %v94
  %v223 = vunpack.c.l.b16 %v95
  %v224 = vunpack.c.l.b16 %v96
  %v225 = vunpack.c.l.b16 %v97
  %v226 = vunpack.c.l.b16 %v98
  %v227 = vunpack.c.l.b16 %v99
  %v228 = vunpack.c.l.b16 %v100
  %v229 = vunpack.c.l.b16 %v101
  %v230 = vunpack.c.l.b16 %v102
  %v231 = vpack.c.b16 %v216, %v215
  %v232 = vpack.c.b16 %v218, %v217
  %v233 = vpack.c.b16 %v220, %v219
  %v234 = vpack.c.b16 %v222, %v221
  %v235 = vpack.c.b16 %v224, %v223
  %v236 = vpack.c.b16 %v226, %v225
  %v237 = vpack.c.b16 %v228, %v227
  %v238 = vpack.c.b16 %v230, %v229
  %247 = vmatpush.bf16.msra.mxu0 %v238
  %248 = vmatpush.bf16.msra.mxu0 %v237
  %249 = vmatpush.bf16.msra.mxu0 %v236
  %250 = vmatpush.bf16.msra.mxu0 %v235
  %251 = vmatpush.bf16.msra.mxu0 %v234
  %252 = vmatpush.bf16.msra.mxu0 %v233
  %253 = vmatpush.bf16.msra.mxu0 %v232
  %254 = vmatpush.bf16.msra.mxu0 %v231
  %255 = vmatmul.bf16.gmra.mxu0 %v167
  %v256 = vpop.f32.mrf.mxu0
  %v257 = vadd.f32 0.0, %v256
  %v258 = vpop.f32.mrf.mxu0
  %v259 = vadd.f32 0.0, %v258
  %260 = vmatmul.bf16.gmra.mxu0 %v168
  %v261 = vpop.f32.mrf.mxu0
  %v262 = vadd.f32 0.0, %v261
  %v263 = vpop.f32.mrf.mxu0
  %v264 = vadd.f32 0.0, %v263
  %265 = vmatmul.bf16.gmra.mxu0 %v169
  %v266 = vpop.f32.mrf.mxu0
  %v267 = vadd.f32 0.0, %v266
  %v268 = vpop.f32.mrf.mxu0
  %v269 = vadd.f32 0.0, %v268
  %270 = vmatmul.bf16.gmra.mxu0 %v170
  %v271 = vpop.f32.mrf.mxu0
  %v272 = vadd.f32 0.0, %v271
  %v273 = vpop.f32.mrf.mxu0
  %v274 = vadd.f32 0.0, %v273
  %275 = vmatmul.bf16.gmra.mxu0 %v171
  %v276 = vpop.f32.mrf.mxu0
  %v277 = vadd.f32 0.0, %v276
  %v278 = vpop.f32.mrf.mxu0
  %v279 = vadd.f32 0.0, %v278
  %280 = vmatmul.bf16.gmra.mxu0 %v172
  %v281 = vpop.f32.mrf.mxu0
  %v282 = vadd.f32 0.0, %v281
  %v283 = vpop.f32.mrf.mxu0
  %v284 = vadd.f32 0.0, %v283
  %285 = vmatmul.bf16.gmra.mxu0 %v173
  %v286 = vpop.f32.mrf.mxu0
  %v287 = vadd.f32 0.0, %v286
  %v288 = vpop.f32.mrf.mxu0
  %v289 = vadd.f32 0.0, %v288
  %290 = vmatmul.bf16.gmra.mxu0 %v174
  %v291 = vpop.f32.mrf.mxu0
  %v292 = vadd.f32 0.0, %v291
  %v293 = vpop.f32.mrf.mxu0
  %v294 = vadd.f32 0.0, %v293
  %295 = vmatmul.bf16.gmra.mxu0 %v175
  %v296 = vpop.f32.mrf.mxu0
  %v297 = vadd.f32 0.0, %v296
  %v298 = vpop.f32.mrf.mxu0
  %v299 = vadd.f32 0.0, %v298
  %300 = vmatmul.bf16.gmra.mxu0 %v176
  %v301 = vpop.f32.mrf.mxu0
  %v302 = vadd.f32 0.0, %v301
  %v303 = vpop.f32.mrf.mxu0
  %v304 = vadd.f32 0.0, %v303
  %305 = vmatmul.bf16.gmra.mxu0 %v177
  %v306 = vpop.f32.mrf.mxu0
  %v307 = vadd.f32 0.0, %v306
  %v308 = vpop.f32.mrf.mxu0
  %v309 = vadd.f32 0.0, %v308
  %310 = vmatmul.bf16.gmra.mxu0 %v178
  %v311 = vpop.f32.mrf.mxu0
  %v312 = vadd.f32 0.0, %v311
  %v313 = vpop.f32.mrf.mxu0
  %v314 = vadd.f32 0.0, %v313
  %315 = vmatmul.bf16.gmra.mxu0 %v179
  %v316 = vpop.f32.mrf.mxu0
  %v317 = vadd.f32 0.0, %v316
  %v318 = vpop.f32.mrf.mxu0
  %v319 = vadd.f32 0.0, %v318
  %320 = vmatmul.bf16.gmra.mxu0 %v180
  %v321 = vpop.f32.mrf.mxu0
  %v322 = vadd.f32 0.0, %v321
  %v323 = vpop.f32.mrf.mxu0
  %v324 = vadd.f32 0.0, %v323
  %325 = vmatmul.bf16.gmra.mxu0 %v181
  %v326 = vpop.f32.mrf.mxu0
  %v327 = vadd.f32 0.0, %v326
  %v328 = vpop.f32.mrf.mxu0
  %v329 = vadd.f32 0.0, %v328
  %330 = vmatmul.bf16.gmra.mxu0 %v182
  %v331 = vpop.f32.mrf.mxu0
  %v332 = vadd.f32 0.0, %v331
  %v333 = vpop.f32.mrf.mxu0
  %v334 = vadd.f32 0.0, %v333
  %335 = vdwg.mxu0
  %v336 = vpack.c.bf16 %v259, %v257
  %v337 = vpack.c.bf16 %v264, %v262
  %v338 = vpack.c.bf16 %v269, %v267
  %v339 = vpack.c.bf16 %v274, %v272
  %v340 = vpack.c.bf16 %v279, %v277
  %v341 = vpack.c.bf16 %v284, %v282
  %v342 = vpack.c.bf16 %v289, %v287
  %v343 = vpack.c.bf16 %v294, %v292
  %v344 = vpack.c.bf16 %v299, %v297
  %v345 = vpack.c.bf16 %v304, %v302
  %v346 = vpack.c.bf16 %v309, %v307
  %v347 = vpack.c.bf16 %v314, %v312
  %v348 = vpack.c.bf16 %v319, %v317
  %v349 = vpack.c.bf16 %v324, %v322
  %v350 = vpack.c.bf16 %v329, %v327
  %v351 = vpack.c.bf16 %v334, %v332
  %v352 = vld [vmem:[%s3] sm:$0x1]
  %v354 = vperm.slane %v352, 0
  %v388 = vunpack.c.l.b16 %v23
  %v389 = vunpack.c.h.b16 %v23
  %v390 = vunpack.c.l.b16 %v24
  %v391 = vunpack.c.h.b16 %v24
  %v392 = vunpack.c.l.b16 %v25
  %v393 = vunpack.c.h.b16 %v25
  %v394 = vunpack.c.l.b16 %v26
  %v395 = vunpack.c.h.b16 %v26
  %v396 = vunpack.c.l.b16 %v27
  %v397 = vunpack.c.h.b16 %v27
  %v398 = vunpack.c.l.b16 %v28
  %v399 = vunpack.c.h.b16 %v28
  %v400 = vunpack.c.l.b16 %v29
  %v401 = vunpack.c.h.b16 %v29
  %v402 = vunpack.c.l.b16 %v30
  %v403 = vunpack.c.h.b16 %v30
  %v404 = vunpack.c.l.b16 %v31
  %v405 = vunpack.c.h.b16 %v31
  %v406 = vunpack.c.l.b16 %v32
  %v407 = vunpack.c.h.b16 %v32
  %v408 = vunpack.c.l.b16 %v33
  %v409 = vunpack.c.h.b16 %v33
  %v410 = vunpack.c.l.b16 %v34
  %v411 = vunpack.c.h.b16 %v34
  %v412 = vunpack.c.l.b16 %v35
  %v413 = vunpack.c.h.b16 %v35
  %v414 = vunpack.c.l.b16 %v36
  %v415 = vunpack.c.h.b16 %v36
  %v416 = vunpack.c.l.b16 %v37
  %v417 = vunpack.c.h.b16 %v37
  %v418 = vunpack.c.l.b16 %v38
  %v419 = vunpack.c.h.b16 %v38
  %v420 = vunpack.c.l.b16 %v39
  %v421 = vunpack.c.h.b16 %v39
  %v422 = vunpack.c.l.b16 %v40
  %v423 = vunpack.c.h.b16 %v40
  %v424 = vunpack.c.l.b16 %v41
  %v425 = vunpack.c.h.b16 %v41
  %v426 = vunpack.c.l.b16 %v42
  %v427 = vunpack.c.h.b16 %v42
  %v428 = vunpack.c.l.b16 %v43
  %v429 = vunpack.c.h.b16 %v43
  %v430 = vunpack.c.l.b16 %v44
  %v431 = vunpack.c.h.b16 %v44
  %v432 = vunpack.c.l.b16 %v45
  %v433 = vunpack.c.h.b16 %v45
  %v434 = vunpack.c.l.b16 %v46
  %v435 = vunpack.c.h.b16 %v46
  %v436 = vunpack.c.l.b16 %v47
  %v437 = vunpack.c.h.b16 %v47
  %v438 = vunpack.c.l.b16 %v48
  %v439 = vunpack.c.h.b16 %v48
  %v440 = vunpack.c.l.b16 %v49
  %v441 = vunpack.c.h.b16 %v49
  %v442 = vunpack.c.l.b16 %v50
  %v443 = vunpack.c.h.b16 %v50
  %v444 = vunpack.c.l.b16 %v51
  %v445 = vunpack.c.h.b16 %v51
  %v446 = vunpack.c.l.b16 %v52
  %v447 = vunpack.c.h.b16 %v52
  %v448 = vunpack.c.l.b16 %v53
  %v449 = vunpack.c.h.b16 %v53
  %v450 = vunpack.c.l.b16 %v54
  %v451 = vunpack.c.h.b16 %v54
  %v452 = vpack.c.b16 %v390, %v388
  %v453 = vpack.c.b16 %v391, %v389
  %v454 = vpack.c.b16 %v394, %v392
  %v455 = vpack.c.b16 %v395, %v393
  %v456 = vpack.c.b16 %v398, %v396
  %v457 = vpack.c.b16 %v399, %v397
  %v458 = vpack.c.b16 %v402, %v400
  %v459 = vpack.c.b16 %v403, %v401
  %v460 = vpack.c.b16 %v406, %v404
  %v461 = vpack.c.b16 %v407, %v405
  %v462 = vpack.c.b16 %v410, %v408
  %v463 = vpack.c.b16 %v411, %v409
  %v464 = vpack.c.b16 %v414, %v412
  %v465 = vpack.c.b16 %v415, %v413
  %v466 = vpack.c.b16 %v418, %v416
  %v467 = vpack.c.b16 %v419, %v417
  %v468 = vpack.c.b16 %v422, %v420
  %v469 = vpack.c.b16 %v423, %v421
  %v470 = vpack.c.b16 %v426, %v424
  %v471 = vpack.c.b16 %v427, %v425
  %v472 = vpack.c.b16 %v430, %v428
  %v473 = vpack.c.b16 %v431, %v429
  %v474 = vpack.c.b16 %v434, %v432
  %v475 = vpack.c.b16 %v435, %v433
  %v476 = vpack.c.b16 %v438, %v436
  %v477 = vpack.c.b16 %v439, %v437
  %v478 = vpack.c.b16 %v442, %v440
  %v479 = vpack.c.b16 %v443, %v441
  %v480 = vpack.c.b16 %v446, %v444
  %v481 = vpack.c.b16 %v447, %v445
  %v482 = vpack.c.b16 %v450, %v448
  %v483 = vpack.c.b16 %v451, %v449
  %516 = vmatpush.bf16.msra.mxu0 %v343
  %517 = vmatpush.bf16.msra.mxu0 %v342
  %518 = vmatpush.bf16.msra.mxu0 %v341
  %519 = vmatpush.bf16.msra.mxu0 %v340
  %520 = vmatpush.bf16.msra.mxu0 %v339
  %521 = vmatpush.bf16.msra.mxu0 %v338
  %522 = vmatpush.bf16.msra.mxu0 %v337
  %523 = vmatpush.bf16.msra.mxu0 %v336
  %524 = vmatmul.bf16.gmra.mxu0 %v452
  %v525 = vpop.f32.mrf.mxu0
  %v526 = vadd.f32 %v354, %v525
  %v527 = vpop.f32.mrf.mxu0
  %v528 = vadd.f32 %v354, %v527
  %529 = vmatmul.bf16.gmra.mxu0 %v454
  %v530 = vpop.f32.mrf.mxu0
  %v531 = vadd.f32 %v354, %v530
  %v532 = vpop.f32.mrf.mxu0
  %v533 = vadd.f32 %v354, %v532
  %534 = vmatmul.bf16.gmra.mxu0 %v456
  %v535 = vpop.f32.mrf.mxu0
  %v536 = vadd.f32 %v354, %v535
  %v537 = vpop.f32.mrf.mxu0
  %v538 = vadd.f32 %v354, %v537
  %539 = vmatmul.bf16.gmra.mxu0 %v458
  %v540 = vpop.f32.mrf.mxu0
  %v541 = vadd.f32 %v354, %v540
  %v542 = vpop.f32.mrf.mxu0
  %v543 = vadd.f32 %v354, %v542
  %544 = vmatmul.bf16.gmra.mxu0 %v460
  %v545 = vpop.f32.mrf.mxu0
  %v546 = vadd.f32 %v354, %v545
  %v547 = vpop.f32.mrf.mxu0
  %v548 = vadd.f32 %v354, %v547
  %549 = vmatmul.bf16.gmra.mxu0 %v462
  %v550 = vpop.f32.mrf.mxu0
  %v551 = vadd.f32 %v354, %v550
  %v552 = vpop.f32.mrf.mxu0
  %v553 = vadd.f32 %v354, %v552
  %554 = vmatmul.bf16.gmra.mxu0 %v464
  %v555 = vpop.f32.mrf.mxu0
  %v556 = vadd.f32 %v354, %v555
  %v557 = vpop.f32.mrf.mxu0
  %v558 = vadd.f32 %v354, %v557
  %559 = vmatmul.bf16.gmra.mxu0 %v466
  %v560 = vpop.f32.mrf.mxu0
  %v561 = vadd.f32 %v354, %v560
  %v562 = vpop.f32.mrf.mxu0
  %v563 = vadd.f32 %v354, %v562
  %564 = vmatmul.bf16.gmra.mxu0 %v468
  %v565 = vpop.f32.mrf.mxu0
  %v566 = vadd.f32 %v354, %v565
  %v567 = vpop.f32.mrf.mxu0
  %v568 = vadd.f32 %v354, %v567
  %569 = vmatmul.bf16.gmra.mxu0 %v470
  %v570 = vpop.f32.mrf.mxu0
  %v571 = vadd.f32 %v354, %v570
  %v572 = vpop.f32.mrf.mxu0
  %v573 = vadd.f32 %v354, %v572
  %574 = vmatmul.bf16.gmra.mxu0 %v472
  %v575 = vpop.f32.mrf.mxu0
  %v576 = vadd.f32 %v354, %v575
  %v577 = vpop.f32.mrf.mxu0
  %v578 = vadd.f32 %v354, %v577
  %579 = vmatmul.bf16.gmra.mxu0 %v474
  %v580 = vpop.f32.mrf.mxu0
  %v581 = vadd.f32 %v354, %v580
  %v582 = vpop.f32.mrf.mxu0
  %v583 = vadd.f32 %v354, %v582
  %584 = vmatmul.bf16.gmra.mxu0 %v476
  %v585 = vpop.f32.mrf.mxu0
  %v586 = vadd.f32 %v354, %v585
  %v587 = vpop.f32.mrf.mxu0
  %v588 = vadd.f32 %v354, %v587
  %589 = vmatmul.bf16.gmra.mxu0 %v478
  %v590 = vpop.f32.mrf.mxu0
  %v591 = vadd.f32 %v354, %v590
  %v592 = vpop.f32.mrf.mxu0
  %v593 = vadd.f32 %v354, %v592
  %594 = vmatmul.bf16.gmra.mxu0 %v480
  %v595 = vpop.f32.mrf.mxu0
  %v596 = vadd.f32 %v354, %v595
  %v597 = vpop.f32.mrf.mxu0
  %v598 = vadd.f32 %v354, %v597
  %599 = vmatmul.bf16.gmra.mxu0 %v482
  %v600 = vpop.f32.mrf.mxu0
  %v601 = vadd.f32 %v354, %v600
  %v602 = vpop.f32.mrf.mxu0
  %v603 = vadd.f32 %v354, %v602
  %604 = vdwg.mxu0
  %605 = vmatpush.bf16.msra.mxu0 %v351
  %606 = vmatpush.bf16.msra.mxu0 %v350
  %607 = vmatpush.bf16.msra.mxu0 %v349
  %608 = vmatpush.bf16.msra.mxu0 %v348
  %609 = vmatpush.bf16.msra.mxu0 %v347
  %610 = vmatpush.bf16.msra.mxu0 %v346
  %611 = vmatpush.bf16.msra.mxu0 %v345
  %612 = vmatpush.bf16.msra.mxu0 %v344
  %613 = vmatmul.bf16.gmra.mxu0 %v453
  %v614 = vpop.f32.mrf.mxu0
  %v615 = vadd.f32 %v526, %v614
  %v616 = vpop.f32.mrf.mxu0
  %v617 = vadd.f32 %v528, %v616
  %618 = vmatmul.bf16.gmra.mxu0 %v455
  %v619 = vpop.f32.mrf.mxu0
  %v620 = vadd.f32 %v531, %v619
  %v621 = vpop.f32.mrf.mxu0
  %v622 = vadd.f32 %v533, %v621
  %623 = vmatmul.bf16.gmra.mxu0 %v457
  %v624 = vpop.f32.mrf.mxu0
  %v625 = vadd.f32 %v536, %v624
  %v626 = vpop.f32.mrf.mxu0
  %v627 = vadd.f32 %v538, %v626
  %628 = vmatmul.bf16.gmra.mxu0 %v459
  %v629 = vpop.f32.mrf.mxu0
  %v630 = vadd.f32 %v541, %v629
  %v631 = vpop.f32.mrf.mxu0
  %v632 = vadd.f32 %v543, %v631
  %633 = vmatmul.bf16.gmra.mxu0 %v461
  %v634 = vpop.f32.mrf.mxu0
  %v635 = vadd.f32 %v546, %v634
  %v636 = vpop.f32.mrf.mxu0
  %v637 = vadd.f32 %v548, %v636
  %638 = vmatmul.bf16.gmra.mxu0 %v463
  %v639 = vpop.f32.mrf.mxu0
  %v640 = vadd.f32 %v551, %v639
  %v641 = vpop.f32.mrf.mxu0
  %v642 = vadd.f32 %v553, %v641
  %643 = vmatmul.bf16.gmra.mxu0 %v465
  %v644 = vpop.f32.mrf.mxu0
  %v645 = vadd.f32 %v556, %v644
  %v646 = vpop.f32.mrf.mxu0
  %v647 = vadd.f32 %v558, %v646
  %648 = vmatmul.bf16.gmra.mxu0 %v467
  %v649 = vpop.f32.mrf.mxu0
  %v650 = vadd.f32 %v561, %v649
  %v651 = vpop.f32.mrf.mxu0
  %v652 = vadd.f32 %v563, %v651
  %653 = vmatmul.bf16.gmra.mxu0 %v469
  %v654 = vpop.f32.mrf.mxu0
  %v655 = vadd.f32 %v566, %v654
  %v656 = vpop.f32.mrf.mxu0
  %v657 = vadd.f32 %v568, %v656
  %658 = vmatmul.bf16.gmra.mxu0 %v471
  %v659 = vpop.f32.mrf.mxu0
  %v660 = vadd.f32 %v571, %v659
  %v661 = vpop.f32.mrf.mxu0
  %v662 = vadd.f32 %v573, %v661
  %663 = vmatmul.bf16.gmra.mxu0 %v473
  %v664 = vpop.f32.mrf.mxu0
  %v665 = vadd.f32 %v576, %v664
  %v666 = vpop.f32.mrf.mxu0
  %v667 = vadd.f32 %v578, %v666
  %668 = vmatmul.bf16.gmra.mxu0 %v475
  %v669 = vpop.f32.mrf.mxu0
  %v670 = vadd.f32 %v581, %v669
  %v671 = vpop.f32.mrf.mxu0
  %v672 = vadd.f32 %v583, %v671
  %673 = vmatmul.bf16.gmra.mxu0 %v477
  %v674 = vpop.f32.mrf.mxu0
  %v675 = vadd.f32 %v586, %v674
  %v676 = vpop.f32.mrf.mxu0
  %v677 = vadd.f32 %v588, %v676
  %678 = vmatmul.bf16.gmra.mxu0 %v479
  %v679 = vpop.f32.mrf.mxu0
  %v680 = vadd.f32 %v591, %v679
  %v681 = vpop.f32.mrf.mxu0
  %v682 = vadd.f32 %v593, %v681
  %683 = vmatmul.bf16.gmra.mxu0 %v481
  %v684 = vpop.f32.mrf.mxu0
  %v685 = vadd.f32 %v596, %v684
  %v686 = vpop.f32.mrf.mxu0
  %v687 = vadd.f32 %v598, %v686
  %688 = vmatmul.bf16.gmra.mxu0 %v483
  %v689 = vpop.f32.mrf.mxu0
  %v690 = vadd.f32 %v601, %v689
  %v691 = vpop.f32.mrf.mxu0
  %v692 = vadd.f32 %v603, %v691
  %693 = vdwg.mxu0
  %v694 = vmax.f32 %v615, 0.0
  %v695 = vmax.f32 %v617, 0.0
  %v696 = vmax.f32 %v620, 0.0
  %v697 = vmax.f32 %v622, 0.0
  %v698 = vmax.f32 %v625, 0.0
  %v699 = vmax.f32 %v627, 0.0
  %v700 = vmax.f32 %v630, 0.0
  %v701 = vmax.f32 %v632, 0.0
  %v702 = vmax.f32 %v635, 0.0
  %v703 = vmax.f32 %v637, 0.0
  %v704 = vmax.f32 %v640, 0.0
  %v705 = vmax.f32 %v642, 0.0
  %v706 = vmax.f32 %v645, 0.0
  %v707 = vmax.f32 %v647, 0.0
  %v708 = vmax.f32 %v650, 0.0
  %v709 = vmax.f32 %v652, 0.0
  %v710 = vmax.f32 %v655, 0.0
  %v711 = vmax.f32 %v657, 0.0
  %v712 = vmax.f32 %v660, 0.0
  %v713 = vmax.f32 %v662, 0.0
  %v714 = vmax.f32 %v665, 0.0
  %v715 = vmax.f32 %v667, 0.0
  %v716 = vmax.f32 %v670, 0.0
  %v717 = vmax.f32 %v672, 0.0
  %v718 = vmax.f32 %v675, 0.0
  %v719 = vmax.f32 %v677, 0.0
  %v720 = vmax.f32 %v680, 0.0
  %v721 = vmax.f32 %v682, 0.0
  %v722 = vmax.f32 %v685, 0.0
  %v723 = vmax.f32 %v687, 0.0
  %v724 = vmax.f32 %v690, 0.0
  %v725 = vmax.f32 %v692, 0.0
  %v726 = vpack.c.bf16 %v695, %v694
  %v727 = vpack.c.bf16 %v697, %v696
  %v728 = vpack.c.bf16 %v699, %v698
  %v729 = vpack.c.bf16 %v701, %v700
  %v730 = vpack.c.bf16 %v703, %v702
  %v731 = vpack.c.bf16 %v705, %v704
  %v732 = vpack.c.bf16 %v707, %v706
  %v733 = vpack.c.bf16 %v709, %v708
  %v734 = vpack.c.bf16 %v711, %v710
  %v735 = vpack.c.bf16 %v713, %v712
  %v736 = vpack.c.bf16 %v715, %v714
  %v737 = vpack.c.bf16 %v717, %v716
  %v738 = vpack.c.bf16 %v719, %v718
  %v739 = vpack.c.bf16 %v721, %v720
  %v740 = vpack.c.bf16 %v723, %v722
  %v741 = vpack.c.bf16 %v725, %v724
  %v742 = vld [vmem:[%s4] sm:$0xf]
  %v743 = vld [vmem:[%s4 + $0x4] sm:$0xf]
  %v744 = vld [vmem:[%s4 + $0x8] sm:$0xf]
  %v745 = vld [vmem:[%s4 + $0xc] sm:$0xf]
  %v746 = vld [vmem:[%s4 + $0x10] sm:$0xf]
  %v747 = vld [vmem:[%s4 + $0x14] sm:$0xf]
  %v748 = vld [vmem:[%s4 + $0x18] sm:$0xf]
  %v749 = vld [vmem:[%s4 + $0x1c] sm:$0xf]
  %v750 = vld [vmem:[%s4 + $0x20] sm:$0xf]
  %v751 = vld [vmem:[%s4 + $0x24] sm:$0xf]
  %v752 = vld [vmem:[%s4 + $0x28] sm:$0xf]
  %v753 = vld [vmem:[%s4 + $0x2c] sm:$0xf]
  %v754 = vld [vmem:[%s4 + $0x30] sm:$0xf]
  %v755 = vld [vmem:[%s4 + $0x34] sm:$0xf]
  %v756 = vld [vmem:[%s4 + $0x38] sm:$0xf]
  %v757 = vld [vmem:[%s4 + $0x3c] sm:$0xf]
  %v774 = vunpack.c.l.b16 %v742
  %v775 = vunpack.c.l.b16 %v743
  %v776 = vunpack.c.l.b16 %v744
  %v777 = vunpack.c.l.b16 %v745
  %v778 = vunpack.c.l.b16 %v746
  %v779 = vunpack.c.l.b16 %v747
  %v780 = vunpack.c.l.b16 %v748
  %v781 = vunpack.c.l.b16 %v749
  %v782 = vunpack.c.l.b16 %v750
  %v783 = vunpack.c.l.b16 %v751
  %v784 = vunpack.c.l.b16 %v752
  %v785 = vunpack.c.l.b16 %v753
  %v786 = vunpack.c.l.b16 %v754
  %v787 = vunpack.c.l.b16 %v755
  %v788 = vunpack.c.l.b16 %v756
  %v789 = vunpack.c.l.b16 %v757
  %v790 = vpack.c.b16 %v775, %v774
  %v791 = vpack.c.b16 %v777, %v776
  %v792 = vpack.c.b16 %v779, %v778
  %v793 = vpack.c.b16 %v781, %v780
  %v794 = vpack.c.b16 %v783, %v782
  %v795 = vpack.c.b16 %v785, %v784
  %v796 = vpack.c.b16 %v787, %v786
  %v797 = vpack.c.b16 %v789, %v788
  %806 = vmatpush.bf16.msra.mxu0 %v797
  %807 = vmatpush.bf16.msra.mxu0 %v796
  %808 = vmatpush.bf16.msra.mxu0 %v795
  %809 = vmatpush.bf16.msra.mxu0 %v794
  %810 = vmatpush.bf16.msra.mxu0 %v793
  %811 = vmatpush.bf16.msra.mxu0 %v792
  %812 = vmatpush.bf16.msra.mxu0 %v791
  %813 = vmatpush.bf16.msra.mxu0 %v790
  %814 = vmatmul.bf16.gmra.mxu0 %v726
  %v815 = vpop.f32.mrf.mxu0
  %v816 = vadd.f32 0.0, %v815
  %v817 = vpop.f32.mrf.mxu0
  %v818 = vadd.f32 0.0, %v817
  %819 = vmatmul.bf16.gmra.mxu0 %v727
  %v820 = vpop.f32.mrf.mxu0
  %v821 = vadd.f32 0.0, %v820
  %v822 = vpop.f32.mrf.mxu0
  %v823 = vadd.f32 0.0, %v822
  %824 = vmatmul.bf16.gmra.mxu0 %v728
  %v825 = vpop.f32.mrf.mxu0
  %v826 = vadd.f32 0.0, %v825
  %v827 = vpop.f32.mrf.mxu0
  %v828 = vadd.f32 0.0, %v827
  %829 = vmatmul.bf16.gmra.mxu0 %v729
  %v830 = vpop.f32.mrf.mxu0
  %v831 = vadd.f32 0.0, %v830
  %v832 = vpop.f32.mrf.mxu0
  %v833 = vadd.f32 0.0, %v832
  %834 = vmatmul.bf16.gmra.mxu0 %v730
  %v835 = vpop.f32.mrf.mxu0
  %v836 = vadd.f32 0.0, %v835
  %v837 = vpop.f32.mrf.mxu0
  %v838 = vadd.f32 0.0, %v837
  %839 = vmatmul.bf16.gmra.mxu0 %v731
  %v840 = vpop.f32.mrf.mxu0
  %v841 = vadd.f32 0.0, %v840
  %v842 = vpop.f32.mrf.mxu0
  %v843 = vadd.f32 0.0, %v842
  %844 = vmatmul.bf16.gmra.mxu0 %v732
  %v845 = vpop.f32.mrf.mxu0
  %v846 = vadd.f32 0.0, %v845
  %v847 = vpop.f32.mrf.mxu0
  %v848 = vadd.f32 0.0, %v847
  %849 = vmatmul.bf16.gmra.mxu0 %v733
  %v850 = vpop.f32.mrf.mxu0
  %v851 = vadd.f32 0.0, %v850
  %v852 = vpop.f32.mrf.mxu0
  %v853 = vadd.f32 0.0, %v852
  %854 = vmatmul.bf16.gmra.mxu0 %v734
  %v855 = vpop.f32.mrf.mxu0
  %v856 = vadd.f32 0.0, %v855
  %v857 = vpop.f32.mrf.mxu0
  %v858 = vadd.f32 0.0, %v857
  %859 = vmatmul.bf16.gmra.mxu0 %v735
  %v860 = vpop.f32.mrf.mxu0
  %v861 = vadd.f32 0.0, %v860
  %v862 = vpop.f32.mrf.mxu0
  %v863 = vadd.f32 0.0, %v862
  %864 = vmatmul.bf16.gmra.mxu0 %v736
  %v865 = vpop.f32.mrf.mxu0
  %v866 = vadd.f32 0.0, %v865
  %v867 = vpop.f32.mrf.mxu0
  %v868 = vadd.f32 0.0, %v867
  %869 = vmatmul.bf16.gmra.mxu0 %v737
  %v870 = vpop.f32.mrf.mxu0
  %v871 = vadd.f32 0.0, %v870
  %v872 = vpop.f32.mrf.mxu0
  %v873 = vadd.f32 0.0, %v872
  %874 = vmatmul.bf16.gmra.mxu0 %v738
  %v875 = vpop.f32.mrf.mxu0
  %v876 = vadd.f32 0.0, %v875
  %v877 = vpop.f32.mrf.mxu0
  %v878 = vadd.f32 0.0, %v877
  %879 = vmatmul.bf16.gmra.mxu0 %v739
  %v880 = vpop.f32.mrf.mxu0
  %v881 = vadd.f32 0.0, %v880
  %v882 = vpop.f32.mrf.mxu0
  %v883 = vadd.f32 0.0, %v882
  %884 = vmatmul.bf16.gmra.mxu0 %v740
  %v885 = vpop.f32.mrf.mxu0
  %v886 = vadd.f32 0.0, %v885
  %v887 = vpop.f32.mrf.mxu0
  %v888 = vadd.f32 0.0, %v887
  %889 = vmatmul.bf16.gmra.mxu0 %v741
  %v890 = vpop.f32.mrf.mxu0
  %v891 = vadd.f32 0.0, %v890
  %v892 = vpop.f32.mrf.mxu0
  %v893 = vadd.f32 0.0, %v892
  %894 = vdwg.mxu0
  %v895 = vpack.c.bf16 %v818, %v816
  %v896 = vpack.c.bf16 %v823, %v821
  %v897 = vpack.c.bf16 %v828, %v826
  %v898 = vpack.c.bf16 %v833, %v831
  %v899 = vpack.c.bf16 %v838, %v836
  %v900 = vpack.c.bf16 %v843, %v841
  %v901 = vpack.c.bf16 %v848, %v846
  %v902 = vpack.c.bf16 %v853, %v851
  %v903 = vpack.c.bf16 %v858, %v856
  %v904 = vpack.c.bf16 %v863, %v861
  %v905 = vpack.c.bf16 %v868, %v866
  %v906 = vpack.c.bf16 %v873, %v871
  %v907 = vpack.c.bf16 %v878, %v876
  %v908 = vpack.c.bf16 %v883, %v881
  %v909 = vpack.c.bf16 %v888, %v886
  %v910 = vpack.c.bf16 %v893, %v891
  %v911 = vld [vmem:[%s5] sm:$0x1]
  %v913 = vperm.slane %v911, 0
  %915 = vmatpush.bf16.msra.mxu0 %v902
  %916 = vmatpush.bf16.msra.mxu0 %v901
  %917 = vmatpush.bf16.msra.mxu0 %v900
  %918 = vmatpush.bf16.msra.mxu0 %v899
  %919 = vmatpush.bf16.msra.mxu0 %v898
  %920 = vmatpush.bf16.msra.mxu0 %v897
  %921 = vmatpush.bf16.msra.mxu0 %v896
  %922 = vmatpush.bf16.msra.mxu0 %v895
  %923 = vmatmul.bf16.gmra.mxu0 %v452
  %v924 = vpop.f32.mrf.mxu0
  %v925 = vadd.f32 %v913, %v924
  %v926 = vpop.f32.mrf.mxu0
  %v927 = vadd.f32 %v913, %v926
  %928 = vmatmul.bf16.gmra.mxu0 %v454
  %v929 = vpop.f32.mrf.mxu0
  %v930 = vadd.f32 %v913, %v929
  %v931 = vpop.f32.mrf.mxu0
  %v932 = vadd.f32 %v913, %v931
  %933 = vmatmul.bf16.gmra.mxu0 %v456
  %v934 = vpop.f32.mrf.mxu0
  %v935 = vadd.f32 %v913, %v934
  %v936 = vpop.f32.mrf.mxu0
  %v937 = vadd.f32 %v913, %v936
  %938 = vmatmul.bf16.gmra.mxu0 %v458
  %v939 = vpop.f32.mrf.mxu0
  %v940 = vadd.f32 %v913, %v939
  %v941 = vpop.f32.mrf.mxu0
  %v942 = vadd.f32 %v913, %v941
  %943 = vmatmul.bf16.gmra.mxu0 %v460
  %v944 = vpop.f32.mrf.mxu0
  %v945 = vadd.f32 %v913, %v944
  %v946 = vpop.f32.mrf.mxu0
  %v947 = vadd.f32 %v913, %v946
  %948 = vmatmul.bf16.gmra.mxu0 %v462
  %v949 = vpop.f32.mrf.mxu0
  %v950 = vadd.f32 %v913, %v949
  %v951 = vpop.f32.mrf.mxu0
  %v952 = vadd.f32 %v913, %v951
  %953 = vmatmul.bf16.gmra.mxu0 %v464
  %v954 = vpop.f32.mrf.mxu0
  %v955 = vadd.f32 %v913, %v954
  %v956 = vpop.f32.mrf.mxu0
  %v957 = vadd.f32 %v913, %v956
  %958 = vmatmul.bf16.gmra.mxu0 %v466
  %v959 = vpop.f32.mrf.mxu0
  %v960 = vadd.f32 %v913, %v959
  %v961 = vpop.f32.mrf.mxu0
  %v962 = vadd.f32 %v913, %v961
  %963 = vmatmul.bf16.gmra.mxu0 %v468
  %v964 = vpop.f32.mrf.mxu0
  %v965 = vadd.f32 %v913, %v964
  %v966 = vpop.f32.mrf.mxu0
  %v967 = vadd.f32 %v913, %v966
  %968 = vmatmul.bf16.gmra.mxu0 %v470
  %v969 = vpop.f32.mrf.mxu0
  %v970 = vadd.f32 %v913, %v969
  %v971 = vpop.f32.mrf.mxu0
  %v972 = vadd.f32 %v913, %v971
  %973 = vmatmul.bf16.gmra.mxu0 %v472
  %v974 = vpop.f32.mrf.mxu0
  %v975 = vadd.f32 %v913, %v974
  %v976 = vpop.f32.mrf.mxu0
  %v977 = vadd.f32 %v913, %v976
  %978 = vmatmul.bf16.gmra.mxu0 %v474
  %v979 = vpop.f32.mrf.mxu0
  %v980 = vadd.f32 %v913, %v979
  %v981 = vpop.f32.mrf.mxu0
  %v982 = vadd.f32 %v913, %v981
  %983 = vmatmul.bf16.gmra.mxu0 %v476
  %v984 = vpop.f32.mrf.mxu0
  %v985 = vadd.f32 %v913, %v984
  %v986 = vpop.f32.mrf.mxu0
  %v987 = vadd.f32 %v913, %v986
  %988 = vmatmul.bf16.gmra.mxu0 %v478
  %v989 = vpop.f32.mrf.mxu0
  %v990 = vadd.f32 %v913, %v989
  %v991 = vpop.f32.mrf.mxu0
  %v992 = vadd.f32 %v913, %v991
  %993 = vmatmul.bf16.gmra.mxu0 %v480
  %v994 = vpop.f32.mrf.mxu0
  %v995 = vadd.f32 %v913, %v994
  %v996 = vpop.f32.mrf.mxu0
  %v997 = vadd.f32 %v913, %v996
  %998 = vmatmul.bf16.gmra.mxu0 %v482
  %v999 = vpop.f32.mrf.mxu0
  %v1000 = vadd.f32 %v913, %v999
  %v1001 = vpop.f32.mrf.mxu0
  %v1002 = vadd.f32 %v913, %v1001
  %1003 = vdwg.mxu0
  %1004 = vmatpush.bf16.msra.mxu0 %v910
  %1005 = vmatpush.bf16.msra.mxu0 %v909
  %1006 = vmatpush.bf16.msra.mxu0 %v908
  %1007 = vmatpush.bf16.msra.mxu0 %v907
  %1008 = vmatpush.bf16.msra.mxu0 %v906
  %1009 = vmatpush.bf16.msra.mxu0 %v905
  %1010 = vmatpush.bf16.msra.mxu0 %v904
  %1011 = vmatpush.bf16.msra.mxu0 %v903
  %1012 = vmatmul.bf16.gmra.mxu0 %v453
  %v1013 = vpop.f32.mrf.mxu0
  %v1014 = vadd.f32 %v925, %v1013
  %v1015 = vpop.f32.mrf.mxu0
  %v1016 = vadd.f32 %v927, %v1015
  %1017 = vmatmul.bf16.gmra.mxu0 %v455
  %v1018 = vpop.f32.mrf.mxu0
  %v1019 = vadd.f32 %v930, %v1018
  %v1020 = vpop.f32.mrf.mxu0
  %v1021 = vadd.f32 %v932, %v1020
  %1022 = vmatmul.bf16.gmra.mxu0 %v457
  %v1023 = vpop.f32.mrf.mxu0
  %v1024 = vadd.f32 %v935, %v1023
  %v1025 = vpop.f32.mrf.mxu0
  %v1026 = vadd.f32 %v937, %v1025
  %1027 = vmatmul.bf16.gmra.mxu0 %v459
  %v1028 = vpop.f32.mrf.mxu0
  %v1029 = vadd.f32 %v940, %v1028
  %v1030 = vpop.f32.mrf.mxu0
  %v1031 = vadd.f32 %v942, %v1030
  %1032 = vmatmul.bf16.gmra.mxu0 %v461
  %v1033 = vpop.f32.mrf.mxu0
  %v1034 = vadd.f32 %v945, %v1033
  %v1035 = vpop.f32.mrf.mxu0
  %v1036 = vadd.f32 %v947, %v1035
  %1037 = vmatmul.bf16.gmra.mxu0 %v463
  %v1038 = vpop.f32.mrf.mxu0
  %v1039 = vadd.f32 %v950, %v1038
  %v1040 = vpop.f32.mrf.mxu0
  %v1041 = vadd.f32 %v952, %v1040
  %1042 = vmatmul.bf16.gmra.mxu0 %v465
  %v1043 = vpop.f32.mrf.mxu0
  %v1044 = vadd.f32 %v955, %v1043
  %v1045 = vpop.f32.mrf.mxu0
  %v1046 = vadd.f32 %v957, %v1045
  %1047 = vmatmul.bf16.gmra.mxu0 %v467
  %v1048 = vpop.f32.mrf.mxu0
  %v1049 = vadd.f32 %v960, %v1048
  %v1050 = vpop.f32.mrf.mxu0
  %v1051 = vadd.f32 %v962, %v1050
  %1052 = vmatmul.bf16.gmra.mxu0 %v469
  %v1053 = vpop.f32.mrf.mxu0
  %v1054 = vadd.f32 %v965, %v1053
  %v1055 = vpop.f32.mrf.mxu0
  %v1056 = vadd.f32 %v967, %v1055
  %1057 = vmatmul.bf16.gmra.mxu0 %v471
  %v1058 = vpop.f32.mrf.mxu0
  %v1059 = vadd.f32 %v970, %v1058
  %v1060 = vpop.f32.mrf.mxu0
  %v1061 = vadd.f32 %v972, %v1060
  %1062 = vmatmul.bf16.gmra.mxu0 %v473
  %v1063 = vpop.f32.mrf.mxu0
  %v1064 = vadd.f32 %v975, %v1063
  %v1065 = vpop.f32.mrf.mxu0
  %v1066 = vadd.f32 %v977, %v1065
  %1067 = vmatmul.bf16.gmra.mxu0 %v475
  %v1068 = vpop.f32.mrf.mxu0
  %v1069 = vadd.f32 %v980, %v1068
  %v1070 = vpop.f32.mrf.mxu0
  %v1071 = vadd.f32 %v982, %v1070
  %1072 = vmatmul.bf16.gmra.mxu0 %v477
  %v1073 = vpop.f32.mrf.mxu0
  %v1074 = vadd.f32 %v985, %v1073
  %v1075 = vpop.f32.mrf.mxu0
  %v1076 = vadd.f32 %v987, %v1075
  %1077 = vmatmul.bf16.gmra.mxu0 %v479
  %v1078 = vpop.f32.mrf.mxu0
  %v1079 = vadd.f32 %v990, %v1078
  %v1080 = vpop.f32.mrf.mxu0
  %v1081 = vadd.f32 %v992, %v1080
  %1082 = vmatmul.bf16.gmra.mxu0 %v481
  %v1083 = vpop.f32.mrf.mxu0
  %v1084 = vadd.f32 %v995, %v1083
  %v1085 = vpop.f32.mrf.mxu0
  %v1086 = vadd.f32 %v997, %v1085
  %1087 = vmatmul.bf16.gmra.mxu0 %v483
  %v1088 = vpop.f32.mrf.mxu0
  %v1089 = vadd.f32 %v1000, %v1088
  %v1090 = vpop.f32.mrf.mxu0
  %v1091 = vadd.f32 %v1002, %v1090
  %1092 = vdwg.mxu0
  %1093 = vst [vmem:[%s6] sm:$0xff] %v1014
  %1094 = vst [vmem:[%s6 + $0x8] sm:$0xff] %v1016
  %1095 = vst [vmem:[%s6 + $0x10] sm:$0xff] %v1019
  %1096 = vst [vmem:[%s6 + $0x18] sm:$0xff] %v1021
  %1097 = vst [vmem:[%s6 + $0x20] sm:$0xff] %v1024
  %1098 = vst [vmem:[%s6 + $0x28] sm:$0xff] %v1026
  %1099 = vst [vmem:[%s6 + $0x30] sm:$0xff] %v1029
  %1100 = vst [vmem:[%s6 + $0x38] sm:$0xff] %v1031
  %1101 = vst [vmem:[%s6 + $0x40] sm:$0xff] %v1034
  %1102 = vst [vmem:[%s6 + $0x48] sm:$0xff] %v1036
  %1103 = vst [vmem:[%s6 + $0x50] sm:$0xff] %v1039
  %1104 = vst [vmem:[%s6 + $0x58] sm:$0xff] %v1041
  %1105 = vst [vmem:[%s6 + $0x60] sm:$0xff] %v1044
  %1106 = vst [vmem:[%s6 + $0x68] sm:$0xff] %v1046
  %1107 = vst [vmem:[%s6 + $0x70] sm:$0xff] %v1049
  %1108 = vst [vmem:[%s6 + $0x78] sm:$0xff] %v1051
  %1109 = vst [vmem:[%s6 + $0x80] sm:$0xff] %v1054
  %1110 = vst [vmem:[%s6 + $0x88] sm:$0xff] %v1056
  %1111 = vst [vmem:[%s6 + $0x90] sm:$0xff] %v1059
  %1112 = vst [vmem:[%s6 + $0x98] sm:$0xff] %v1061
  %1113 = vst [vmem:[%s6 + $0xa0] sm:$0xff] %v1064
  %1114 = vst [vmem:[%s6 + $0xa8] sm:$0xff] %v1066
  %1115 = vst [vmem:[%s6 + $0xb0] sm:$0xff] %v1069
  %1116 = vst [vmem:[%s6 + $0xb8] sm:$0xff] %v1071
  %1117 = vst [vmem:[%s6 + $0xc0] sm:$0xff] %v1074
  %1118 = vst [vmem:[%s6 + $0xc8] sm:$0xff] %v1076
  %1119 = vst [vmem:[%s6 + $0xd0] sm:$0xff] %v1079
  %1120 = vst [vmem:[%s6 + $0xd8] sm:$0xff] %v1081
  %1121 = vst [vmem:[%s6 + $0xe0] sm:$0xff] %v1084
  %1122 = vst [vmem:[%s6 + $0xe8] sm:$0xff] %v1086
  %1123 = vst [vmem:[%s6 + $0xf0] sm:$0xff] %v1089
  %1124 = vst [vmem:[%s6 + $0xf8] sm:$0xff] %v1091
  // Predicated region
  $region26: #{encoder_forward.1} parent=0 // pred_check
    _
  $region27: #{encoder_forward.1} parent=0 // pred_check_branch
    %1126 = sbr.rel (0) target = $region29
  $region28: #{encoder_forward.1} parent=0 // pred_region
    _
  $region29: #{encoder_forward.1} parent=0 // pred_fallthru
    _
  // Predicated region
  $region30: #{encoder_forward.1} parent=0 // pred_check
    _
  $region31: #{encoder_forward.1} parent=0 // pred_check_branch
    %1128 = sbr.rel (0) target = $region33
  $region32: #{encoder_forward.1} parent=0 // pred_region
    _
  $region33: #{encoder_forward.1} parent=0 // pred_fallthru
    _

</llo_original>
